<compile_context>
chip_gen: v6e
topology: v6e:2x2x1
jax: 0.10.0
libtpu: 0.0.40
codegen_flags: <defaults>
</compile_context>

<pallas_src>
import jax
import jax.numpy as jnp
from jax.experimental import pallas as pl
from jax.experimental.pallas import tpu as pltpu


def attention_kernel(enc_ref, dec_ref,
                     w_enc_ref, b_enc_ref,
                     w_dec_ref, b_dec_ref,
                     w_att_ref,
                     alpha_ref, weighted_ref):
    # enc_ref:      (TB, R, E) f32   encoder features for TB batch rows
    # dec_ref:      (TB, D)    f32   decoder hidden states
    # w_enc_ref:    (E, A)     bf16  encoder_to_attention weight (pre-transposed)
    # b_enc_ref:    (1, A)     f32
    # w_dec_ref:    (D, A)     bf16  decoder_to_attention weight (pre-transposed)
    # b_dec_ref:    (1, A)     f32
    # w_att_ref:    (1, A)     f32   attention weight held as a lane row
    # alpha_ref:    (TB, R)    f32   softmax weights
    # weighted_ref: (TB, E)    f32   alpha-weighted encoder features
    TB, R, E = enc_ref.shape
    A = w_enc_ref.shape[1]
    mm_dtype = w_enc_ref.dtype

    enc = enc_ref[...]                                             # (TB, R, E) f32

    # Encoder projection: ONE MXU matmul (M = TB*R, K = E, N = A), bf16 inputs,
    # f32 accumulation.  The (TB,R,E)->(TB*R,E) reshape is layout-preserving.
    regions = jnp.dot(enc.astype(mm_dtype).reshape(TB * R, E), w_enc_ref[...],
                      preferred_element_type=jnp.float32)
    regions = (regions + b_enc_ref[...]).reshape(TB, R, A)         # f32

    # Decoder projection: batched over the TB rows of this grid step.
    context = jnp.dot(dec_ref[...].astype(mm_dtype), w_dec_ref[...],
                      preferred_element_type=jnp.float32) + b_dec_ref[...]

    combined = jnp.maximum(regions + context[:, None, :], 0.0)     # (TB, R, A)

    # Attention score: VPU multiply + lane reduce over A (instead of an N=1
    # MXU matmul); result lands directly in (batch-rows, R-as-lanes) layout.
    # The scalar bias of the `attention` Linear is intentionally dropped:
    # softmax is shift-invariant, so it has no effect on alpha or weighted.
    att = jnp.sum(combined * w_att_ref[...], axis=-1)              # (TB, R)

    # Softmax over regions (lane axis); normalization via EUP reciprocal.
    m = jnp.max(att, axis=-1, keepdims=True)
    e = jnp.exp(att - m)
    denom = jnp.sum(e, axis=-1, keepdims=True)
    alpha = e * pl.reciprocal(denom, approx=True)                  # (TB, R)

    # Weighted sum over regions against the original f32 encoder features.
    # For large R/E deployments swap this for a batched lax.dot_general
    # ((TB,1,R) x (TB,R,E) contracting over R) so the reduce runs on the MXU;
    # at these small R/E the VPU/XLU path is cheaper than an M=1 matmul.
    weighted = jnp.sum(alpha[:, :, None] * enc, axis=1)            # (TB, E)

    alpha_ref[...] = alpha
    weighted_ref[...] = weighted


def prepare_params(params, *, matmul_dtype=jnp.bfloat16):
    """One-time weight pre-pack (hoisted out of the forward call).

    * Linear weights transposed to (in, out) so the kernel does plain
      (rows, in) @ (in, out) MXU matmuls.
    * The two projection weights are cast to bf16 once; biases and the
      attention row stay f32.
    * b_att is dropped (softmax shift-invariance makes it a no-op).
    """
    f32 = jnp.float32
    A = params["w_enc"].shape[0]            # torch Linear weight is (out, in)
    return {
        "w_enc_t": jnp.asarray(params["w_enc"], f32).T.astype(matmul_dtype),   # (E, A)
        "b_enc": jnp.asarray(params["b_enc"], f32).reshape(1, A),
        "w_dec_t": jnp.asarray(params["w_dec"], f32).T.astype(matmul_dtype),   # (D, A)
        "b_dec": jnp.asarray(params["b_dec"], f32).reshape(1, A),
        "w_att_row": jnp.asarray(params["w_att"], f32).reshape(1, A),
    }


def _choose_tb(B, num_blocks):
    # >=2 parallel grid steps feed both v7x TensorCores; on single-TC v5e/v6e
    # a single block (TB = B) avoids the ~0.35us/step pipeline overhead.
    # A sub-full batch block must keep its sublane dim a multiple of 8.
    if num_blocks > 1 and B % num_blocks == 0 and (B // num_blocks) % 8 == 0:
        return B // num_blocks
    return B


def _vmem_limit_bytes(TB, R, E, D, A):
    # Derived from the actual buffer sizes (double-buffered) with generous
    # headroom for compiler-internal scratch; clamped to v7x's 64 MiB VMEM.
    f32, bf16 = 4, 2
    buf = (TB * R * E * f32          # encoder block
           + TB * D * f32            # decoder block
           + TB * R * f32            # alpha out
           + TB * E * f32            # weighted out
           + (E * A + D * A) * bf16  # projection weights (resident)
           + 3 * A * f32)            # biases + attention row
    need = 2 * buf                   # double buffering
    return int(min(max(4 * need, 8 * 1024 * 1024), 64 * 1024 * 1024))


def attention_forward(encoder_out, decoder_hidden, packed, *, num_blocks=2):
    """encoder_out: (B, R, E) f32; decoder_hidden: (B, D) f32.

    `packed` is the output of prepare_params.  Returns
    (alpha (B, R), weighted_encoder_out (B, E)).
    """
    B, R, E = encoder_out.shape
    D = decoder_hidden.shape[1]
    A = packed["w_enc_t"].shape[1]

    TB = _choose_tb(B, num_blocks)
    grid = (B // TB,)

    grid_spec = pltpu.PrefetchScalarGridSpec(
        num_scalar_prefetch=0,
        grid=grid,
        in_specs=[
            pl.BlockSpec((TB, R, E), lambda b: (b, 0, 0)),   # encoder_out
            pl.BlockSpec((TB, D), lambda b: (b, 0)),         # decoder_hidden
            pl.BlockSpec((E, A), lambda b: (0, 0)),          # w_enc_t (resident)
            pl.BlockSpec((1, A), lambda b: (0, 0)),          # b_enc
            pl.BlockSpec((D, A), lambda b: (0, 0)),          # w_dec_t (resident)
            pl.BlockSpec((1, A), lambda b: (0, 0)),          # b_dec
            pl.BlockSpec((1, A), lambda b: (0, 0)),          # w_att row
        ],
        out_specs=[
            pl.BlockSpec((TB, R), lambda b: (b, 0)),         # alpha
            pl.BlockSpec((TB, E), lambda b: (b, 0)),         # weighted
        ],
    )

    alpha, weighted = pl.pallas_call(
        attention_kernel,
        out_shape=(
            jax.ShapeDtypeStruct((B, R), jnp.float32),
            jax.ShapeDtypeStruct((B, E), jnp.float32),
        ),
        grid_spec=grid_spec,
        compiler_params=pltpu.CompilerParams(
            dimension_semantics=("parallel",),   # batch grid axis -> megacore
            vmem_limit_bytes=_vmem_limit_bytes(TB, R, E, D, A),
        ),
    )(encoder_out.astype(jnp.float32), decoder_hidden.astype(jnp.float32),
      packed["w_enc_t"], packed["b_enc"],
      packed["w_dec_t"], packed["b_dec"],
      packed["w_att_row"])

    return alpha, weighted


def attention_reference(encoder_out, decoder_hidden, params):
    """Pure-JAX reference mirroring the PyTorch forward."""
    regions = encoder_out @ params["w_enc"].T + params["b_enc"]          # (B,R,A)
    context = decoder_hidden @ params["w_dec"].T + params["b_dec"]       # (B,A)
    combined = jax.nn.relu(regions + context[:, None, :])                # (B,R,A)
    att = (combined @ params["w_att"].T + params["b_att"])[..., 0]       # (B,R)
    alpha = jax.nn.softmax(att, axis=1)                                  # (B,R)
    weighted = (encoder_out * alpha[..., None]).sum(axis=1)              # (B,E)
    return alpha, weighted


def init_params(key, encoder_dim, decoder_dim, attention_dim):
    """Deterministic init mimicking torch.nn.Linear (uniform +-1/sqrt(fan_in))."""
    ks = jax.random.split(key, 6)
    def lin(kw, kb, fan_in, fan_out):
        bound = 1.0 / jnp.sqrt(fan_in)
        w = jax.random.uniform(kw, (fan_out, fan_in), jnp.float32, -bound, bound)
        b = jax.random.uniform(kb, (fan_out,), jnp.float32, -bound, bound)
        return w, b
    w_dec, b_dec = lin(ks[0], ks[1], decoder_dim, attention_dim)
    w_enc, b_enc = lin(ks[2], ks[3], encoder_dim, attention_dim)
    w_att, b_att = lin(ks[4], ks[5], attention_dim, 1)
    return {"w_enc": w_enc, "b_enc": b_enc,
            "w_dec": w_dec, "b_dec": b_dec,
            "w_att": w_att, "b_att": b_att}


if __name__ == "__main__":
    # batch, regions, encoder_dim, decoder_dim, attention_dim
    # B=16 with num_blocks=2 -> TB=8, a 2-step parallel grid (both v7x TCs busy).
    B, R, E, D, A = 16, 8, 32, 16, 32

    key = jax.random.PRNGKey(0)
    k_enc, k_dec, k_par = jax.random.split(key, 3)
    encoder_out = jax.random.normal(k_enc, (B, R, E), jnp.float32)
    decoder_hidden = jax.random.normal(k_dec, (B, D), jnp.float32)
    params = init_params(k_par, E, D, A)

    packed = prepare_params(params)   # one-time transpose + bf16 cast, no per-call work
    alpha, weighted = attention_forward(encoder_out, decoder_hidden, packed)
    jax.block_until_ready((alpha, weighted))

    alpha_ref, weighted_ref = attention_reference(encoder_out, decoder_hidden, params)
    assert alpha.shape == (B, R) and weighted.shape == (B, E)
    # bf16 MXU inputs + approximate EUP reciprocal -> compare at ~1e-2 level.
    assert jnp.allclose(alpha, alpha_ref, atol=2e-2, rtol=2e-2)
    assert jnp.allclose(weighted, weighted_ref, atol=2e-2, rtol=2e-2)

    print("KERNEL_OK")
</pallas_src>

<mosaic_0001>
module attributes {stable_mosaic.version = 11 : i64} {
  func.func @attention_kernel(%arg0: i32, %arg1: memref<8x8x32xf32, #tpu.memory_space<vmem>>, %arg2: memref<8x16xf32, #tpu.memory_space<vmem>>, %arg3: memref<32x32xbf16, #tpu.memory_space<vmem>>, %arg4: memref<1x32xf32, #tpu.memory_space<vmem>>, %arg5: memref<16x32xbf16, #tpu.memory_space<vmem>>, %arg6: memref<1x32xf32, #tpu.memory_space<vmem>>, %arg7: memref<1x32xf32, #tpu.memory_space<vmem>>, %arg8: memref<8x8xf32, #tpu.memory_space<vmem>>, %arg9: memref<8x32xf32, #tpu.memory_space<vmem>>) attributes {dimension_semantics = [#tpu.dimension_semantics<parallel>], iteration_bounds = array<i64: 2>, scalar_prefetch = 0 : i64, scratch_operands = 0 : i64, tpu.core_type = #tpu.core_type<tc>, window_params = [{transform_indices = @transform_0, window_bounds = array<i64: 8, 8, 32>}, {transform_indices = @transform_1, window_bounds = array<i64: 8, 16>}, {pipeline_mode = #tpu.pipeline_mode<synchronous>, transform_indices = @transform_2, window_bounds = array<i64: 32, 32>}, {pipeline_mode = #tpu.pipeline_mode<synchronous>, transform_indices = @transform_3, window_bounds = array<i64: 1, 32>}, {pipeline_mode = #tpu.pipeline_mode<synchronous>, transform_indices = @transform_4, window_bounds = array<i64: 16, 32>}, {pipeline_mode = #tpu.pipeline_mode<synchronous>, transform_indices = @transform_5, window_bounds = array<i64: 1, 32>}, {pipeline_mode = #tpu.pipeline_mode<synchronous>, transform_indices = @transform_6, window_bounds = array<i64: 1, 32>}, {transform_indices = @transform_7, window_bounds = array<i64: 8, 8>}, {transform_indices = @transform_8, window_bounds = array<i64: 8, 32>}]} {
    %c0 = arith.constant 0 : index
    %c0_0 = arith.constant 0 : index
    %c0_1 = arith.constant 0 : index
    %0 = vector.load %arg1[%c0, %c0_0, %c0_1] : memref<8x8x32xf32, #tpu.memory_space<vmem>>, vector<8x8x32xf32>
    %1 = arith.truncf %0 : vector<8x8x32xf32> to vector<8x8x32xbf16>
    %2 = vector.shape_cast %1 : vector<8x8x32xbf16> to vector<64x32xbf16>
    %c0_2 = arith.constant 0 : index
    %c0_3 = arith.constant 0 : index
    %3 = vector.load %arg3[%c0_2, %c0_3] : memref<32x32xbf16, #tpu.memory_space<vmem>>, vector<32x32xbf16>
    %cst = arith.constant dense<0.000000e+00> : vector<64x32xf32>
    %4 = tpu.matmul %2, %3, %cst {dimension_numbers = #tpu.dot_dimension_numbers<[1], [0], [0], [1], [0, 0, 1, 1], [], []>} : vector<64x32xbf16>, vector<32x32xbf16>, vector<64x32xf32> -> vector<64x32xf32>
    %c0_4 = arith.constant 0 : index
    %c0_5 = arith.constant 0 : index
    %5 = vector.load %arg4[%c0_4, %c0_5] : memref<1x32xf32, #tpu.memory_space<vmem>>, vector<1x32xf32>
    %6 = vector.broadcast %5 : vector<1x32xf32> to vector<64x32xf32>
    %7 = arith.addf %4, %6 : vector<64x32xf32>
    %8 = vector.shape_cast %7 : vector<64x32xf32> to vector<8x8x32xf32>
    %c0_6 = arith.constant 0 : index
    %c0_7 = arith.constant 0 : index
    %9 = vector.load %arg2[%c0_6, %c0_7] : memref<8x16xf32, #tpu.memory_space<vmem>>, vector<8x16xf32>
    %10 = arith.truncf %9 : vector<8x16xf32> to vector<8x16xbf16>
    %c0_8 = arith.constant 0 : index
    %c0_9 = arith.constant 0 : index
    %11 = vector.load %arg5[%c0_8, %c0_9] : memref<16x32xbf16, #tpu.memory_space<vmem>>, vector<16x32xbf16>
    %cst_10 = arith.constant dense<0.000000e+00> : vector<8x32xf32>
    %12 = tpu.matmul %10, %11, %cst_10 {dimension_numbers = #tpu.dot_dimension_numbers<[1], [0], [0], [1], [0, 0, 1, 1], [], []>} : vector<8x16xbf16>, vector<16x32xbf16>, vector<8x32xf32> -> vector<8x32xf32>
    %c0_11 = arith.constant 0 : index
    %c0_12 = arith.constant 0 : index
    %13 = vector.load %arg6[%c0_11, %c0_12] : memref<1x32xf32, #tpu.memory_space<vmem>>, vector<1x32xf32>
    %14 = vector.broadcast %13 : vector<1x32xf32> to vector<8x32xf32>
    %15 = arith.addf %12, %14 : vector<8x32xf32>
    %16 = vector.shape_cast %15 : vector<8x32xf32> to vector<8x1x32xf32>
    %17 = vector.broadcast %16 : vector<8x1x32xf32> to vector<8x8x32xf32>
    %18 = arith.addf %8, %17 : vector<8x8x32xf32>
    %cst_13 = arith.constant 0.000000e+00 : f32
    %19 = vector.broadcast %cst_13 : f32 to vector<8x8x32xf32>
    %20 = arith.maximumf %18, %19 : vector<8x8x32xf32>
    %c0_14 = arith.constant 0 : index
    %c0_15 = arith.constant 0 : index
    %21 = vector.load %arg7[%c0_14, %c0_15] : memref<1x32xf32, #tpu.memory_space<vmem>>, vector<1x32xf32>
    %22 = vector.shape_cast %21 : vector<1x32xf32> to vector<1x1x32xf32>
    %23 = vector.broadcast %22 : vector<1x1x32xf32> to vector<8x8x32xf32>
    %24 = arith.mulf %20, %23 : vector<8x8x32xf32>
    %cst_16 = arith.constant dense<0.000000e+00> : vector<8x8xf32>
    %25 = vector.multi_reduction <add>, %24, %cst_16 [2] : vector<8x8x32xf32> to vector<8x8xf32>
    %cst_17 = arith.constant dense<0xFF800000> : vector<8xf32>
    %26 = vector.multi_reduction <maximumf>, %25, %cst_17 [1] : vector<8x8xf32> to vector<8xf32>
    %27 = vector.shape_cast %26 : vector<8xf32> to vector<8x1xf32>
    %28 = vector.broadcast %27 : vector<8x1xf32> to vector<8x8xf32>
    %29 = arith.subf %25, %28 : vector<8x8xf32>
    %30 = math.exp %29 : vector<8x8xf32>
    %cst_18 = arith.constant dense<0.000000e+00> : vector<8xf32>
    %31 = vector.multi_reduction <add>, %30, %cst_18 [1] : vector<8x8xf32> to vector<8xf32>
    %32 = vector.shape_cast %31 : vector<8xf32> to vector<8x1xf32>
    %33 = tpu.reciprocal %32 {approx = true} : vector<8x1xf32> -> vector<8x1xf32>
    %34 = vector.broadcast %33 : vector<8x1xf32> to vector<8x8xf32>
    %35 = arith.mulf %30, %34 : vector<8x8xf32>
    %36 = vector.shape_cast %35 : vector<8x8xf32> to vector<8x8x1xf32>
    %37 = vector.broadcast %36 : vector<8x8x1xf32> to vector<8x8x32xf32>
    %38 = arith.mulf %37, %0 : vector<8x8x32xf32>
    %cst_19 = arith.constant dense<0.000000e+00> : vector<8x32xf32>
    %39 = vector.multi_reduction <add>, %38, %cst_19 [1] : vector<8x8x32xf32> to vector<8x32xf32>
    %c0_20 = arith.constant 0 : index
    %c0_21 = arith.constant 0 : index
    %40 = vector.load %arg8[%c0_20, %c0_21] : memref<8x8xf32, #tpu.memory_space<vmem>>, vector<8x8xf32>
    tpu.vector_store %arg8[%c0_20, %c0_21], %35 {strides = array<i32>} : memref<8x8xf32, #tpu.memory_space<vmem>>, vector<8x8xf32>,
    %c0_22 = arith.constant 0 : index
    %c0_23 = arith.constant 0 : index
    %41 = vector.load %arg9[%c0_22, %c0_23] : memref<8x32xf32, #tpu.memory_space<vmem>>, vector<8x32xf32>
    tpu.vector_store %arg9[%c0_22, %c0_23], %39 {strides = array<i32>} : memref<8x32xf32, #tpu.memory_space<vmem>>, vector<8x32xf32>,
    return
  }
  func.func @transform_0(%arg0: i32) -> (i32, i32, i32) {
    %c0_i32 = arith.constant 0 : i32
    %c0_i32_0 = arith.constant 0 : i32
    %c0_i32_1 = arith.constant 0 : i32
    return %arg0, %c0_i32, %c0_i32_0 : i32, i32, i32
  }
  func.func @transform_1(%arg0: i32) -> (i32, i32) {
    %c0_i32 = arith.constant 0 : i32
    %c0_i32_0 = arith.constant 0 : i32
    return %arg0, %c0_i32 : i32, i32
  }
  func.func @transform_2(%arg0: i32) -> (i32, i32) {
    %c0_i32 = arith.constant 0 : i32
    %c0_i32_0 = arith.constant 0 : i32
    %c0_i32_1 = arith.constant 0 : i32
    return %c0_i32, %c0_i32_0 : i32, i32
  }
  func.func @transform_3(%arg0: i32) -> (i32, i32) {
    %c0_i32 = arith.constant 0 : i32
    %c0_i32_0 = arith.constant 0 : i32
    %c0_i32_1 = arith.constant 0 : i32
    return %c0_i32, %c0_i32_0 : i32, i32
  }
  func.func @transform_4(%arg0: i32) -> (i32, i32) {
    %c0_i32 = arith.constant 0 : i32
    %c0_i32_0 = arith.constant 0 : i32
    %c0_i32_1 = arith.constant 0 : i32
    return %c0_i32, %c0_i32_0 : i32, i32
  }
  func.func @transform_5(%arg0: i32) -> (i32, i32) {
    %c0_i32 = arith.constant 0 : i32
    %c0_i32_0 = arith.constant 0 : i32
    %c0_i32_1 = arith.constant 0 : i32
    return %c0_i32, %c0_i32_0 : i32, i32
  }
  func.func @transform_6(%arg0: i32) -> (i32, i32) {
    %c0_i32 = arith.constant 0 : i32
    %c0_i32_0 = arith.constant 0 : i32
    %c0_i32_1 = arith.constant 0 : i32
    return %c0_i32, %c0_i32_0 : i32, i32
  }
  func.func @transform_7(%arg0: i32) -> (i32, i32) {
    %c0_i32 = arith.constant 0 : i32
    %c0_i32_0 = arith.constant 0 : i32
    return %arg0, %c0_i32 : i32, i32
  }
  func.func @transform_8(%arg0: i32) -> (i32, i32) {
    %c0_i32 = arith.constant 0 : i32
    %c0_i32_0 = arith.constant 0 : i32
    return %arg0, %c0_i32 : i32, i32
  }
}

</mosaic_0001>

<llo_original>
// kernel: tpu_custom_call.1
$region0: #{tpu_custom_call.1}
  #allocation0 [shape = 'u32[]', space=smem, size = 0x4, offset = 0x4, fixed_abs, tag = 'smem constant byte address 0x4 - core index']
  #allocation1 [shape = 'u32[144,128]{1,0:T(1,128)}', space=vmem, size = 0x12000, scoped, tag = 'internal scratch']
  %s0 = inlined_call_operand.hbm [shape: f32[16,8,32], index: 0, kind: input, shape index: {}]
  %s1 = inlined_call_operand.hbm [shape: f32[16,16], index: 1, kind: input, shape index: {}]
  %s2 = inlined_call_operand.hbm [shape: bf16[32,32], index: 2, kind: input, shape index: {}]
  %s3 = inlined_call_operand.vmem [shape: f32[1,32], index: 3, kind: input, shape index: {}]
  %s4 = inlined_call_operand.hbm [shape: bf16[16,32], index: 4, kind: input, shape index: {}]
  %s5 = inlined_call_operand.vmem [shape: f32[1,32], index: 5, kind: input, shape index: {}]
  %s6 = inlined_call_operand.vmem [shape: f32[1,32], index: 6, kind: input, shape index: {}]
  %s7 = inlined_call_operand.vmem [shape: f32[16,8], index: 7, kind: output, shape index: {0}]
  %s8 = inlined_call_operand.hbm [shape: f32[16,32], index: 8, kind: output, shape index: {1}]
  %9 = xla_tuple %s7, %s8
  %s10 = sld [smem:[#allocation0]]
  $region85: #{tpu_custom_call.1} parent=0
    _
  %s12 = ssub.s32 1, %s10
  %s13 = scalar_select 0, %s12, %s10
  $region1: #{tpu_custom_call.1} parent=0
    #allocation2 [shape = 'u8[65536]{0}', space=vmem, size = 0x10000, scoped, tag = 'input window, operand 0']
    #allocation3 [shape = 's32[2]{0}', space=sflag, size = 0x8, scoped, tag = 'scoped memory for tpu_custom_call.1']
    #allocation4 [shape = 's32[2]{0}', space=sflag, size = 0x8, scoped, tag = 'scoped memory for tpu_custom_call.1']
    #allocation5 [shape = 'u8[8192]{0}', space=vmem, size = 0x2000, scoped, tag = 'input window, operand 1']
    #allocation6 [shape = 's32[2]{0}', space=sflag, size = 0x8, scoped, tag = 'scoped memory for tpu_custom_call.1']
    #allocation7 [shape = 'u8[8192]{0}', space=vmem, size = 0x2000, scoped, tag = 'input window, operand 2, single buffered']
    #allocation8 [shape = 'u8[4096]{0}', space=vmem, size = 0x1000, scoped, tag = 'input window, operand 4, single buffered']
    #allocation9 [shape = 's32[1]{0}', space=sflag, size = 0x4, scoped, tag = 'scoped memory for tpu_custom_call.1']
    #allocation10 [shape = 'u8[8192]{0}', space=vmem, size = 0x2000, scoped, tag = 'output window, operand 1']
    %14 = vsyncpa [#allocation3], 0
    %s15 = scalar_lea.sflag [#allocation3], 1
    %16 = vsyncpa %s15, 0
    %17 = vsyncpa [#allocation6], 0
    %s18 = scalar_lea.sflag [#allocation6], 1
    %19 = vsyncpa %s18, 0
    %20 = vsyncpa [#allocation9], 0
    %21 = vsyncpa [#allocation4], 0
    %s22 = scalar_lea.sflag [#allocation4], 1
    %23 = vsyncpa %s22, 0
    loop: start=0, step=1, limit=4
    $region2: #{tpu_custom_call.1} parent=1 // loop_pre_header
      _
    $region3: #{tpu_custom_call.1} parent=1 // loop_header
      %s25 = sphi 0, %s29
      %p26 = scmp.ge.s32.totalorder %s25, 4
      %s35 = sphi 0, %s37
      %s38 = sphi 0, %s35
      %s39 = sphi 0, %s38
      %s55 = sphi 0, %s39
      %s61 = sphi 0, %s63
      %s64 = sphi 0, %s61
      %s65 = sphi 0, %s64
      %s81 = sphi 0, %s65
      %s85 = sphi 0, %s85
      %s87 = sphi 0, %s85
      %s88 = sphi 0, %s87
      %s102 = sphi 0, %s88
      %s106 = sphi 0, %s106
      %s108 = sphi 0, %s106
      %s109 = sphi 0, %s108
      %s123 = sphi 0, %s109
      %s127 = sphi 0, %s127
      %s129 = sphi 0, %s127
      %s130 = sphi 0, %s129
      %s144 = sphi 0, %s130
      %s148 = sphi 0, %s148
      %s150 = sphi 0, %s148
      %s151 = sphi 0, %s150
      %s165 = sphi 0, %s151
      %s169 = sphi 0, %s169
      %s171 = sphi 0, %s169
      %s172 = sphi 0, %s171
      %s186 = sphi 0, %s172
      %s192 = sphi 0, %s194
      %s195 = sphi 0, %s192
      %s196 = sphi 0, %s195
      %s212 = sphi 0, %s196
      %s218 = sphi 0, %s220
      %s221 = sphi 0, %s218
      %s222 = sphi 0, %s221
      %s238 = sphi 0, %s222
    $region4: #{tpu_custom_call.1} parent=1 // loop_header_branch
      %28 = sbr.rel (%p26) target = $region8
    $region5: #{tpu_custom_call.1} parent=1 // loop_body
      %s30 = ssub.s32 %s25, 1
      %s31 = ssub.s32 %s25, 2
      %s32 = sadd.s32 %s25, 1
      %s33 = ssub.s32 %s25, %s32
      %p34 = scmp.eq.s32.totalorder %s33, 0
      %s36 = sadd.s32 %s35, 1
      %s37 = scalar_select %p34, %s35, %s36
      %p40 = pneg %p34
      %p41 = scmp.eq.s32.totalorder %s25, 1
      %p42 = por %p40, %p41
      %p43 = scmp.ne.s32.totalorder %s35, %s38
      %p44 = scmp.eq.s32.totalorder %s25, 0
      %p45 = por %p43, %p44
      %p46 = scmp.ne.s32.totalorder %s35, %s38
      %p47 = scmp.eq.s32.totalorder %s30, 1
      %p48 = por %p46, %p47
      %p49 = scmp.ne.s32.totalorder %s38, %s39
      %p50 = scmp.eq.s32.totalorder %s30, 0
      %p51 = por %p49, %p50
      %p52 = scmp.ne.s32.totalorder %s38, %s39
      %p53 = scmp.eq.s32.totalorder %s31, 1
      %p54 = por %p52, %p53
      %p56 = scmp.ne.s32.totalorder %s39, %s55
      %p57 = scmp.eq.s32.totalorder %s31, 0
      %p58 = por %p56, %p57
      %s59 = ssub.s32 %s25, %s32
      %p60 = scmp.eq.s32.totalorder %s59, 0
      %s62 = sadd.s32 %s61, 1
      %s63 = scalar_select %p60, %s61, %s62
      %p66 = pneg %p60
      %p67 = scmp.eq.s32.totalorder %s25, 1
      %p68 = por %p66, %p67
      %p69 = scmp.ne.s32.totalorder %s61, %s64
      %p70 = scmp.eq.s32.totalorder %s25, 0
      %p71 = por %p69, %p70
      %p72 = scmp.ne.s32.totalorder %s61, %s64
      %p73 = scmp.eq.s32.totalorder %s30, 1
      %p74 = por %p72, %p73
      %p75 = scmp.ne.s32.totalorder %s64, %s65
      %p76 = scmp.eq.s32.totalorder %s30, 0
      %p77 = por %p75, %p76
      %p78 = scmp.ne.s32.totalorder %s64, %s65
      %p79 = scmp.eq.s32.totalorder %s31, 1
      %p80 = por %p78, %p79
      %p82 = scmp.ne.s32.totalorder %s65, %s81
      %p83 = scmp.eq.s32.totalorder %s31, 0
      %p84 = por %p82, %p83
      %s86 = sadd.s32 %s85, 1
      %p89 = scmp.eq.s32.totalorder %s25, 1
      %p90 = scmp.ne.s32.totalorder %s85, %s87
      %p91 = scmp.eq.s32.totalorder %s25, 0
      %p92 = por %p90, %p91
      %p93 = scmp.ne.s32.totalorder %s85, %s87
      %p94 = scmp.eq.s32.totalorder %s30, 1
      %p95 = por %p93, %p94
      %p96 = scmp.ne.s32.totalorder %s87, %s88
      %p97 = scmp.eq.s32.totalorder %s30, 0
      %p98 = por %p96, %p97
      %p99 = scmp.ne.s32.totalorder %s87, %s88
      %p100 = scmp.eq.s32.totalorder %s31, 1
      %p101 = por %p99, %p100
      %p103 = scmp.ne.s32.totalorder %s88, %s102
      %p104 = scmp.eq.s32.totalorder %s31, 0
      %p105 = por %p103, %p104
      %s107 = sadd.s32 %s106, 1
      %p110 = scmp.eq.s32.totalorder %s25, 1
      %p111 = scmp.ne.s32.totalorder %s106, %s108
      %p112 = scmp.eq.s32.totalorder %s25, 0
      %p113 = por %p111, %p112
      %p114 = scmp.ne.s32.totalorder %s106, %s108
      %p115 = scmp.eq.s32.totalorder %s30, 1
      %p116 = por %p114, %p115
      %p117 = scmp.ne.s32.totalorder %s108, %s109
      %p118 = scmp.eq.s32.totalorder %s30, 0
      %p119 = por %p117, %p118
      %p120 = scmp.ne.s32.totalorder %s108, %s109
      %p121 = scmp.eq.s32.totalorder %s31, 1
      %p122 = por %p120, %p121
      %p124 = scmp.ne.s32.totalorder %s109, %s123
      %p125 = scmp.eq.s32.totalorder %s31, 0
      %p126 = por %p124, %p125
      %s128 = sadd.s32 %s127, 1
      %p131 = scmp.eq.s32.totalorder %s25, 1
      %p132 = scmp.ne.s32.totalorder %s127, %s129
      %p133 = scmp.eq.s32.totalorder %s25, 0
      %p134 = por %p132, %p133
      %p135 = scmp.ne.s32.totalorder %s127, %s129
      %p136 = scmp.eq.s32.totalorder %s30, 1
      %p137 = por %p135, %p136
      %p138 = scmp.ne.s32.totalorder %s129, %s130
      %p139 = scmp.eq.s32.totalorder %s30, 0
      %p140 = por %p138, %p139
      %p141 = scmp.ne.s32.totalorder %s129, %s130
      %p142 = scmp.eq.s32.totalorder %s31, 1
      %p143 = por %p141, %p142
      %p145 = scmp.ne.s32.totalorder %s130, %s144
      %p146 = scmp.eq.s32.totalorder %s31, 0
      %p147 = por %p145, %p146
      %s149 = sadd.s32 %s148, 1
      %p152 = scmp.eq.s32.totalorder %s25, 1
      %p153 = scmp.ne.s32.totalorder %s148, %s150
      %p154 = scmp.eq.s32.totalorder %s25, 0
      %p155 = por %p153, %p154
      %p156 = scmp.ne.s32.totalorder %s148, %s150
      %p157 = scmp.eq.s32.totalorder %s30, 1
      %p158 = por %p156, %p157
      %p159 = scmp.ne.s32.totalorder %s150, %s151
      %p160 = scmp.eq.s32.totalorder %s30, 0
      %p161 = por %p159, %p160
      %p162 = scmp.ne.s32.totalorder %s150, %s151
      %p163 = scmp.eq.s32.totalorder %s31, 1
      %p164 = por %p162, %p163
      %p166 = scmp.ne.s32.totalorder %s151, %s165
      %p167 = scmp.eq.s32.totalorder %s31, 0
      %p168 = por %p166, %p167
      %s170 = sadd.s32 %s169, 1
      %p173 = scmp.eq.s32.totalorder %s25, 1
      %p174 = scmp.ne.s32.totalorder %s169, %s171
      %p175 = scmp.eq.s32.totalorder %s25, 0
      %p176 = por %p174, %p175
      %p177 = scmp.ne.s32.totalorder %s169, %s171
      %p178 = scmp.eq.s32.totalorder %s30, 1
      %p179 = por %p177, %p178
      %p180 = scmp.ne.s32.totalorder %s171, %s172
      %p181 = scmp.eq.s32.totalorder %s30, 0
      %p182 = por %p180, %p181
      %p183 = scmp.ne.s32.totalorder %s171, %s172
      %p184 = scmp.eq.s32.totalorder %s31, 1
      %p185 = por %p183, %p184
      %p187 = scmp.ne.s32.totalorder %s172, %s186
      %p188 = scmp.eq.s32.totalorder %s31, 0
      %p189 = por %p187, %p188
      %s190 = ssub.s32 %s25, %s32
      %p191 = scmp.eq.s32.totalorder %s190, 0
      %s193 = sadd.s32 %s192, 1
      %s194 = scalar_select %p191, %s192, %s193
      %p197 = pneg %p191
      %p198 = scmp.eq.s32.totalorder %s25, 1
      %p199 = por %p197, %p198
      %p200 = scmp.ne.s32.totalorder %s192, %s195
      %p201 = scmp.eq.s32.totalorder %s25, 0
      %p202 = por %p200, %p201
      %p203 = scmp.ne.s32.totalorder %s192, %s195
      %p204 = scmp.eq.s32.totalorder %s30, 1
      %p205 = por %p203, %p204
      %p206 = scmp.ne.s32.totalorder %s195, %s196
      %p207 = scmp.eq.s32.totalorder %s30, 0
      %p208 = por %p206, %p207
      %p209 = scmp.ne.s32.totalorder %s195, %s196
      %p210 = scmp.eq.s32.totalorder %s31, 1
      %p211 = por %p209, %p210
      %p213 = scmp.ne.s32.totalorder %s196, %s212
      %p214 = scmp.eq.s32.totalorder %s31, 0
      %p215 = por %p213, %p214
      %s216 = ssub.s32 %s25, %s32
      %p217 = scmp.eq.s32.totalorder %s216, 0
      %s219 = sadd.s32 %s218, 1
      %s220 = scalar_select %p217, %s218, %s219
      %p223 = pneg %p217
      %p224 = scmp.eq.s32.totalorder %s25, 1
      %p225 = por %p223, %p224
      %p226 = scmp.ne.s32.totalorder %s218, %s221
      %p227 = scmp.eq.s32.totalorder %s25, 0
      %p228 = por %p226, %p227
      %p229 = scmp.ne.s32.totalorder %s218, %s221
      %p230 = scmp.eq.s32.totalorder %s30, 1
      %p231 = por %p229, %p230
      %p232 = scmp.ne.s32.totalorder %s221, %s222
      %p233 = scmp.eq.s32.totalorder %s30, 0
      %p234 = por %p232, %p233
      %p235 = scmp.ne.s32.totalorder %s221, %s222
      %p236 = scmp.eq.s32.totalorder %s31, 1
      %p237 = por %p235, %p236
      %p239 = scmp.ne.s32.totalorder %s222, %s238
      %p240 = scmp.eq.s32.totalorder %s31, 0
      %p241 = por %p239, %p240
      %p242 = scmp.le.s32.totalorder 1, %s25
      %p243 = scmp.lt.s32.totalorder %s25, 3
      %p244 = pnand %p242, %p243
      %p245 = pneg %p244
      // Predicated region
      $region9: #{tpu_custom_call.1} parent=5 // pred_check
        _
      $region10: #{tpu_custom_call.1} parent=5 // pred_check_branch
        %247 = sbr.rel (%p244) target = $region12
      $region11: #{tpu_custom_call.1} parent=5 // pred_region
        %s248 = ssub.s32 %s25, 1
        // Predicated region
        $region13: #{tpu_custom_call.1} parent=11 // pred_check
          %p249 = pneg %p98
        $region14: #{tpu_custom_call.1} parent=11 // pred_check_branch
          %251 = sbr.rel (%p249) target = $region16
        $region15: #{tpu_custom_call.1} parent=11 // pred_region
          %s253 = ssub.s32 256, 256
          %254 = vsyncadd [#allocation6], %s253
          %s255 = sshll.u32 [#allocation7], 4
          %s256 = int_to_ptr.vmem [resolvable:$true] %s255
          %261 = dma.hbm_to_vmem [thread:$0]  %s2, 256, %s256, [#allocation6], 64, 64, 4
        $region16: #{tpu_custom_call.1} parent=11 // pred_fallthru
          _
        // Predicated region
        $region17: #{tpu_custom_call.1} parent=11 // pred_check
          %p262 = pneg %p119
        $region18: #{tpu_custom_call.1} parent=11 // pred_check_branch
          %264 = sbr.rel (%p262) target = $region20
        $region19: #{tpu_custom_call.1} parent=11 // pred_region
          _
        $region20: #{tpu_custom_call.1} parent=11 // pred_fallthru
          _
        // Predicated region
        $region21: #{tpu_custom_call.1} parent=11 // pred_check
          %p265 = pneg %p140
        $region22: #{tpu_custom_call.1} parent=11 // pred_check_branch
          %267 = sbr.rel (%p265) target = $region24
        $region23: #{tpu_custom_call.1} parent=11 // pred_region
          %s269 = ssub.s32 128, 128
          %270 = vsyncadd [#allocation9], %s269
          %s271 = sshll.u32 [#allocation8], 4
          %s272 = int_to_ptr.vmem [resolvable:$true] %s271
          %277 = dma.hbm_to_vmem [thread:$0]  %s4, 128, %s272, [#allocation9], 64, 64, 4
        $region24: #{tpu_custom_call.1} parent=11 // pred_fallthru
          _
        // Predicated region
        $region25: #{tpu_custom_call.1} parent=11 // pred_check
          %p278 = pneg %p161
        $region26: #{tpu_custom_call.1} parent=11 // pred_check_branch
          %280 = sbr.rel (%p278) target = $region28
        $region27: #{tpu_custom_call.1} parent=11 // pred_region
          _
        $region28: #{tpu_custom_call.1} parent=11 // pred_fallthru
          _
        // Predicated region
        $region29: #{tpu_custom_call.1} parent=11 // pred_check
          %p281 = pneg %p182
        $region30: #{tpu_custom_call.1} parent=11 // pred_check_branch
          %283 = sbr.rel (%p281) target = $region32
        $region31: #{tpu_custom_call.1} parent=11 // pred_region
          _
        $region32: #{tpu_custom_call.1} parent=11 // pred_fallthru
          _
      $region12: #{tpu_custom_call.1} parent=5 // pred_fallthru
        _
      %p284 = scmp.lt.s32.totalorder %s25, 2
      // Predicated region
      $region33: #{tpu_custom_call.1} parent=5 // pred_check
        %p285 = pneg %p284
      $region34: #{tpu_custom_call.1} parent=5 // pred_check_branch
        %287 = sbr.rel (%p285) target = $region36
      $region35: #{tpu_custom_call.1} parent=5 // pred_region
        // Predicated region
        $region37: #{tpu_custom_call.1} parent=35 // pred_check
          %p288 = pneg %p45
        $region38: #{tpu_custom_call.1} parent=35 // pred_check_branch
          %290 = sbr.rel (%p288) target = $region40
        $region39: #{tpu_custom_call.1} parent=35 // pred_region
          %s291 = sand.u32 %s35, 1
          %s292 = scalar_lea.sflag [#allocation3], %s291
          %s293 = sand.u32 %s35, 1
          %s294 = smul.addr %s293, 64
          %s295 = scalar_lea.vmem [#allocation2], %s294
          %s296 = smul.u32 8, %s25
          %s298 = ssub.s32 1024, 1024
          %299 = vsyncadd %s292, %s298
          %s300 = smul.addr %s296, 128
          %s301 = scalar_lea.hbm %s0, %s300
          %s302 = sshll.u32 %s295, 4
          %s303 = int_to_ptr.vmem [resolvable:$true] %s302
          %308 = dma.hbm_to_vmem [thread:$0]  %s301, 1024, %s303, %s292, 128, 128, 8
        $region40: #{tpu_custom_call.1} parent=35 // pred_fallthru
          _
        // Predicated region
        $region41: #{tpu_custom_call.1} parent=35 // pred_check
          %p309 = pneg %p71
        $region42: #{tpu_custom_call.1} parent=35 // pred_check_branch
          %311 = sbr.rel (%p309) target = $region44
        $region43: #{tpu_custom_call.1} parent=35 // pred_region
          %s312 = sand.u32 %s25, 1
          %s313 = scalar_lea.sflag [#allocation6], %s312
          %s314 = sand.u32 %s61, 1
          %s315 = smul.addr %s314, 8
          %s316 = scalar_lea.vmem [#allocation5], %s315
          %s318 = ssub.s32 128, 128
          %319 = vsyncadd %s313, %s318
          %s320 = smul.addr %s25, 128
          %s321 = scalar_lea.hbm %s1, %s320
          %s323 = sshll.u32 %s316, 4
          %s324 = int_to_ptr.vmem [resolvable:$true] %s323
          %326 = dma.hbm_to_vmem [thread:$0]  %s321, 128, %s324, %s313
        $region44: #{tpu_custom_call.1} parent=35 // pred_fallthru
          _
      $region36: #{tpu_custom_call.1} parent=5 // pred_fallthru
        _
      %p327 = scmp.le.s32.totalorder 1, %s25
      %p328 = scmp.lt.s32.totalorder %s25, 3
      %p329 = pnand %p327, %p328
      %p330 = pneg %p329
      // Predicated region
      $region45: #{tpu_custom_call.1} parent=5 // pred_check
        _
      $region46: #{tpu_custom_call.1} parent=5 // pred_check_branch
        %332 = sbr.rel (%p329) target = $region48
      $region47: #{tpu_custom_call.1} parent=5 // pred_region
        %s333 = ssub.s32 %s25, 1
        %s334 = sand.u32 %s38, 1
        %s335 = scalar_lea.sflag [#allocation3], %s334
        %s336 = sand.u32 %s38, 1
        %s337 = smul.addr %s336, 64
        %s338 = scalar_lea.vmem [#allocation2], %s337
        // Predicated region
        $region49: #{tpu_custom_call.1} parent=47 // pred_check
          %p339 = pneg %p51
        $region50: #{tpu_custom_call.1} parent=47 // pred_check_branch
          %341 = sbr.rel (%p339) target = $region52
        $region51: #{tpu_custom_call.1} parent=47 // pred_region
          %342 = dma.done %s335, 1024
        $region52: #{tpu_custom_call.1} parent=47 // pred_fallthru
          _
        %s343 = sand.u32 %s30, 1
        %s344 = scalar_lea.sflag [#allocation6], %s343
        %s345 = sand.u32 %s64, 1
        %s346 = smul.addr %s345, 8
        %s347 = scalar_lea.vmem [#allocation5], %s346
        // Predicated region
        $region53: #{tpu_custom_call.1} parent=47 // pred_check
          %p348 = pneg %p77
        $region54: #{tpu_custom_call.1} parent=47 // pred_check_branch
          %350 = sbr.rel (%p348) target = $region56
        $region55: #{tpu_custom_call.1} parent=47 // pred_region
          %351 = dma.done %s344, 128
        $region56: #{tpu_custom_call.1} parent=47 // pred_fallthru
          _
        // Predicated region
        $region57: #{tpu_custom_call.1} parent=47 // pred_check
          %p352 = pneg %p98
        $region58: #{tpu_custom_call.1} parent=47 // pred_check_branch
          %354 = sbr.rel (%p352) target = $region60
        $region59: #{tpu_custom_call.1} parent=47 // pred_region
          %355 = dma.done [#allocation6], 256
        $region60: #{tpu_custom_call.1} parent=47 // pred_fallthru
          _
        // Predicated region
        $region61: #{tpu_custom_call.1} parent=47 // pred_check
          %p356 = pneg %p140
        $region62: #{tpu_custom_call.1} parent=47 // pred_check_branch
          %358 = sbr.rel (%p356) target = $region64
        $region63: #{tpu_custom_call.1} parent=47 // pred_region
          %359 = dma.done [#allocation9], 128
        $region64: #{tpu_custom_call.1} parent=47 // pred_fallthru
          _
        %s360 = sand.u32 %s38, 1
        %s361 = scalar_lea.sflag [#allocation3], %s360
        %s362 = sand.u32 %s38, 1
        %s363 = smul.addr %s362, 64
        %s364 = scalar_lea.vmem [#allocation2], %s363
        %p365 = pneg %p51
        %p366 = pneg %p48
        %s367 = sand.u32 %s30, 1
        %s368 = scalar_lea.sflag [#allocation6], %s367
        %s369 = sand.u32 %s64, 1
        %s370 = smul.addr %s369, 8
        %s371 = scalar_lea.vmem [#allocation5], %s370
        %p372 = pneg %p77
        %p373 = pneg %p74
        %p374 = pneg %p98
        %p375 = pneg %p95
        %p376 = pneg %p119
        %p377 = pneg %p116
        %p378 = pneg %p140
        %p379 = pneg %p137
        %p380 = pneg %p161
        %p381 = pneg %p158
        %p382 = pneg %p182
        %p383 = pneg %p179
        %p384 = pneg %p208
        %p385 = pneg %p205
        %p386 = scmp.lt.s32.totalorder %s30, 1
        %s387 = scalar_select %p386, %s30, 1
        %s388 = smul.addr %s387, 8
        %s389 = scalar_lea.vmem %s7, %s388
        %p390 = pneg %p234
        %p391 = pneg %p231
        %s392 = sand.u32 %s221, 1
        %s393 = scalar_lea.sflag [#allocation4], %s392
        %s394 = sand.u32 %s221, 1
        %s395 = smul.addr %s394, 8
        %s396 = scalar_lea.vmem [#allocation10], %s395
        %s397 = smul.u32 8, %s30
        %p398 = scmp.lt.s32.totalorder %s30, 1
        %s399 = scalar_select %p398, %s30, 1
        %s400 = smul.addr %s399, 8
        %s401 = scalar_lea.vmem %s7, %s400
        %v403 = vld [vmem:[%s338] sm:$0xff]
        %v404 = vld [vmem:[%s338 + $0x8] sm:$0xff]
        %v405 = vld [vmem:[%s338 + $0x10] sm:$0xff]
        %v406 = vld [vmem:[%s338 + $0x18] sm:$0xff]
        %v407 = vld [vmem:[%s338 + $0x20] sm:$0xff]
        %v408 = vld [vmem:[%s338 + $0x28] sm:$0xff]
        %v409 = vld [vmem:[%s338 + $0x30] sm:$0xff]
        %v410 = vld [vmem:[%s338 + $0x38] sm:$0xff]
        %v411 = vpack.c.bf16 %v403, %v403
        %v412 = vpack.c.bf16 %v404, %v404
        %v413 = vpack.c.bf16 %v405, %v405
        %v414 = vpack.c.bf16 %v406, %v406
        %v415 = vpack.c.bf16 %v407, %v407
        %v416 = vpack.c.bf16 %v408, %v408
        %v417 = vpack.c.bf16 %v409, %v409
        %v418 = vpack.c.bf16 %v410, %v410
        %v419 = vld [vmem:[#allocation7] sm:$0xf]
        %v420 = vld [vmem:[#allocation7 + $0x4] sm:$0xf]
        %v421 = vld [vmem:[#allocation7 + $0x8] sm:$0xf]
        %v422 = vld [vmem:[#allocation7 + $0xc] sm:$0xf]
        %v423 = vld [vmem:[%s3] sm:$0x1]
        %v425 = vlaneseq
        %v426 = vshrl.u32 %v425, 7
        %v427 = vsub.s32 0, %v426
        %v428 = vrot.slane %v423, %v427
        %v438 = vunpack.c.l.b16 %v411
        %v439 = vunpack.c.l.b16 %v412
        %v440 = vunpack.c.l.b16 %v413
        %v441 = vunpack.c.l.b16 %v414
        %v442 = vunpack.c.l.b16 %v415
        %v443 = vunpack.c.l.b16 %v416
        %v444 = vunpack.c.l.b16 %v417
        %v445 = vunpack.c.l.b16 %v418
        %v446 = vpack.c.b16 %v439, %v438
        %v447 = vpack.c.b16 %v441, %v440
        %v448 = vpack.c.b16 %v443, %v442
        %v449 = vpack.c.b16 %v445, %v444
        %v454 = vunpack.c.l.b16 %v419
        %v455 = vunpack.c.l.b16 %v420
        %v456 = vunpack.c.l.b16 %v421
        %v457 = vunpack.c.l.b16 %v422
        %v458 = vpack.c.b16 %v455, %v454
        %v459 = vpack.c.b16 %v457, %v456
        %vm462 = vcmask 261120
        %v464 = vsel %vm462, %v446, 0
        %v467 = vsel %vm462, %v447, 0
        %v470 = vsel %vm462, %v448, 0
        %v473 = vsel %vm462, %v449, 0
        %475 = vmatprep.subr.bf16.mxu0 0
        %476 = vmatpush1.bf16.msra.mxu0 0
        %477 = vmatprep.subr.bf16.mxu0 0
        %478 = vmatpush1.bf16.msra.mxu0 0
        %479 = vmatprep.subr.bf16.mxu0 0
        %480 = vmatpush1.bf16.msra.mxu0 0
        %481 = vmatprep.subr.bf16.mxu0 0
        %482 = vmatpush1.bf16.msra.mxu0 0
        %483 = vmatprep.subr.bf16.mxu0 0
        %484 = vmatpush1.bf16.msra.mxu0 0
        %485 = vmatprep.subr.bf16.mxu0 0
        %486 = vmatpush1.bf16.msra.mxu0 0
        %487 = vmatprep.subr.bf16.mxu0 0
        %488 = vmatpush1.bf16.msra.mxu0 %v459
        %489 = vmatprep.subr.bf16.mxu0 0
        %490 = vmatpush1.bf16.msra.mxu0 %v458
        %491 = vmatprep.subr.bf16.mxu0 0
        %492 = vmatpush2.bf16.msra.mxu0 0
        %493 = vmatprep.subr.bf16.mxu0 0
        %494 = vmatpush2.bf16.msra.mxu0 0
        %495 = vmatprep.subr.bf16.mxu0 0
        %496 = vmatpush2.bf16.msra.mxu0 0
        %497 = vmatprep.subr.bf16.mxu0 0
        %498 = vmatpush2.bf16.msra.mxu0 0
        %499 = vmatprep.subr.bf16.mxu0 0
        %500 = vmatpush2.bf16.msra.mxu0 0
        %501 = vmatprep.subr.bf16.mxu0 0
        %502 = vmatpush2.bf16.msra.mxu0 0
        %503 = vmatprep.subr.bf16.mxu0 0
        %504 = vmatpush2.bf16.msra.mxu0 0
        %505 = vmatprep.subr.bf16.mxu0 0
        %506 = vmatpush2.bf16.msra.mxu0 0
        %507 = vmatprep.mubr.bf16.mxu0 0
        %508 = vmatmul.mubr.bf16.gmra.mxu0 %v464
        %v509 = vpop.f32.mrf.mxu0
        %v510 = vadd.f32 %v428, %v509
        %v511 = vpop.f32.mrf.mxu0
        %v512 = vpop.f32.mrf.mxu0
        %v513 = vadd.f32 %v428, %v512
        %v514 = vpop.f32.mrf.mxu0
        %515 = vmatprep.mubr.bf16.mxu0 0
        %516 = vmatmul.mubr.bf16.gmra.mxu0 %v467
        %v517 = vpop.f32.mrf.mxu0
        %v518 = vadd.f32 %v428, %v517
        %v519 = vpop.f32.mrf.mxu0
        %v520 = vpop.f32.mrf.mxu0
        %v521 = vadd.f32 %v428, %v520
        %v522 = vpop.f32.mrf.mxu0
        %523 = vmatprep.mubr.bf16.mxu0 0
        %524 = vmatmul.mubr.bf16.gmra.mxu0 %v470
        %v525 = vpop.f32.mrf.mxu0
        %v526 = vadd.f32 %v428, %v525
        %v527 = vpop.f32.mrf.mxu0
        %v528 = vpop.f32.mrf.mxu0
        %v529 = vadd.f32 %v428, %v528
        %v530 = vpop.f32.mrf.mxu0
        %531 = vmatprep.mubr.bf16.mxu0 0
        %532 = vmatmul.mubr.bf16.gmra.mxu0 %v473
        %v533 = vpop.f32.mrf.mxu0
        %v534 = vadd.f32 %v428, %v533
        %v535 = vpop.f32.mrf.mxu0
        %v536 = vpop.f32.mrf.mxu0
        %v537 = vadd.f32 %v428, %v536
        %v538 = vpop.f32.mrf.mxu0
        %539 = vdwg.mxu0
        %v540 = vld [vmem:[%s347] sm:$0xff]
        %v541 = vpack.c.bf16 %v540, %v540
        %v542 = vld [vmem:[#allocation8] sm:$0xf]
        %v543 = vld [vmem:[#allocation8 + $0x4] sm:$0xf]
        %v544 = vld [vmem:[%s5] sm:$0x1]
        %v546 = vlaneseq
        %v547 = vshrl.u32 %v546, 7
        %v548 = vsub.s32 0, %v547
        %v549 = vrot.slane %v544, %v548
        %v553 = vunpack.c.l.b16 %v542
        %v554 = vunpack.c.l.b16 %v543
        %v555 = vpack.c.b16 %v554, %v553
        %vm557 = vcmask 130048
        %v559 = vsel %vm557, %v541, 0
        %561 = vmatprep.subr.bf16.mxu0 0
        %562 = vmatpush1.bf16.msra.mxu0 0
        %563 = vmatprep.subr.bf16.mxu0 0
        %564 = vmatpush1.bf16.msra.mxu0 0
        %565 = vmatprep.subr.bf16.mxu0 0
        %566 = vmatpush1.bf16.msra.mxu0 0
        %567 = vmatprep.subr.bf16.mxu0 0
        %568 = vmatpush1.bf16.msra.mxu0 0
        %569 = vmatprep.subr.bf16.mxu0 0
        %570 = vmatpush1.bf16.msra.mxu0 0
        %571 = vmatprep.subr.bf16.mxu0 0
        %572 = vmatpush1.bf16.msra.mxu0 0
        %573 = vmatprep.subr.bf16.mxu0 0
        %574 = vmatpush1.bf16.msra.mxu0 0
        %575 = vmatprep.subr.bf16.mxu0 0
        %576 = vmatpush1.bf16.msra.mxu0 %v555
        %577 = vmatprep.subr.bf16.mxu0 0
        %578 = vmatpush2.bf16.msra.mxu0 0
        %579 = vmatprep.subr.bf16.mxu0 0
        %580 = vmatpush2.bf16.msra.mxu0 0
        %581 = vmatprep.subr.bf16.mxu0 0
        %582 = vmatpush2.bf16.msra.mxu0 0
        %583 = vmatprep.subr.bf16.mxu0 0
        %584 = vmatpush2.bf16.msra.mxu0 0
        %585 = vmatprep.subr.bf16.mxu0 0
        %586 = vmatpush2.bf16.msra.mxu0 0
        %587 = vmatprep.subr.bf16.mxu0 0
        %588 = vmatpush2.bf16.msra.mxu0 0
        %589 = vmatprep.subr.bf16.mxu0 0
        %590 = vmatpush2.bf16.msra.mxu0 0
        %591 = vmatprep.subr.bf16.mxu0 0
        %592 = vmatpush2.bf16.msra.mxu0 0
        %593 = vmatprep.mubr.bf16.mxu0 0
        %594 = vmatmul.mubr.bf16.gmra.mxu0 %v559
        %v595 = vpop.f32.mrf.mxu0
        %v596 = vadd.f32 %v549, %v595
        %v597 = vpop.f32.mrf.mxu0
        %v598 = vpop.f32.mrf.mxu0
        %v599 = vpop.f32.mrf.mxu0
        %600 = vdwg.mxu0
        %v602 = vcombine.high %v596, %v596
        %v604 = vunpack.c.l.s4 1966171168
        %v605 = vunpack.c.0.s8 %v604
        %v606 = vlaneseq
        %v607 = vshrl.u32 %v606, 7
        %v608 = vsub.s32 %v605, %v607
        %v609 = vrot.slane %v596, %v608
        %v611 = vunpack.c.l.s4 1966171168
        %v612 = vunpack.c.0.s8 %v611
        %v613 = vlaneseq
        %v614 = vshrl.u32 %v613, 7
        %v615 = vsub.s32 %v612, %v614
        %v616 = vrot.slane %v602, %v615
        %v617 = vcombine.high %v609, %v609
        %v618 = vcombine.high %v616, %v616
        %v620 = vunpack.c.l.s4 1966171168
        %v621 = vunpack.c.0.s8 %v620
        %v622 = vlaneseq
        %v623 = vshrl.u32 %v622, 7
        %v624 = vsub.s32 %v621, %v623
        %v625 = vrot.slane %v609, %v624
        %v627 = vunpack.c.l.s4 1966171168
        %v628 = vunpack.c.0.s8 %v627
        %v629 = vlaneseq
        %v630 = vshrl.u32 %v629, 7
        %v631 = vsub.s32 %v628, %v630
        %v632 = vrot.slane %v616, %v631
        %v634 = vunpack.c.l.s4 1966171168
        %v635 = vunpack.c.0.s8 %v634
        %v636 = vlaneseq
        %v637 = vshrl.u32 %v636, 7
        %v638 = vsub.s32 %v635, %v637
        %v639 = vrot.slane %v617, %v638
        %v641 = vunpack.c.l.s4 1966171168
        %v642 = vunpack.c.0.s8 %v641
        %v643 = vlaneseq
        %v644 = vshrl.u32 %v643, 7
        %v645 = vsub.s32 %v642, %v644
        %v646 = vrot.slane %v618, %v645
        %v647 = vcombine.high %v625, %v625
        %v648 = vcombine.high %v632, %v632
        %v649 = vcombine.high %v639, %v639
        %v650 = vcombine.high %v646, %v646
        %v651 = vlaneseq
        %v652 = vshrl.u32 %v651, 7
        %v653 = vsub.s32 0, %v652
        %v654 = vrot.slane %v625, %v653
        %v655 = vlaneseq
        %v656 = vshrl.u32 %v655, 7
        %v657 = vsub.s32 0, %v656
        %v658 = vrot.slane %v639, %v657
        %v659 = vlaneseq
        %v660 = vshrl.u32 %v659, 7
        %v661 = vsub.s32 0, %v660
        %v662 = vrot.slane %v647, %v661
        %v663 = vlaneseq
        %v664 = vshrl.u32 %v663, 7
        %v665 = vsub.s32 0, %v664
        %v666 = vrot.slane %v649, %v665
        %v667 = vlaneseq
        %v668 = vshrl.u32 %v667, 7
        %v669 = vsub.s32 0, %v668
        %v670 = vrot.slane %v632, %v669
        %v671 = vlaneseq
        %v672 = vshrl.u32 %v671, 7
        %v673 = vsub.s32 0, %v672
        %v674 = vrot.slane %v646, %v673
        %v675 = vlaneseq
        %v676 = vshrl.u32 %v675, 7
        %v677 = vsub.s32 0, %v676
        %v678 = vrot.slane %v648, %v677
        %v679 = vlaneseq
        %v680 = vshrl.u32 %v679, 7
        %v681 = vsub.s32 0, %v680
        %v682 = vrot.slane %v650, %v681
        %v691 = vadd.f32 %v510, %v654
        %v692 = vadd.f32 %v513, %v658
        %v693 = vadd.f32 %v518, %v662
        %v694 = vadd.f32 %v521, %v666
        %v695 = vadd.f32 %v526, %v670
        %v696 = vadd.f32 %v529, %v674
        %v697 = vadd.f32 %v534, %v678
        %v698 = vadd.f32 %v537, %v682
        %v699 = vmax.f32 %v691, 0.0
        %v700 = vmax.f32 %v692, 0.0
        %v701 = vmax.f32 %v693, 0.0
        %v702 = vmax.f32 %v694, 0.0
        %v703 = vmax.f32 %v695, 0.0
        %v704 = vmax.f32 %v696, 0.0
        %v705 = vmax.f32 %v697, 0.0
        %v706 = vmax.f32 %v698, 0.0
        %v707 = vld [vmem:[%s6] sm:$0x1]
        %v709 = vlaneseq
        %v710 = vshrl.u32 %v709, 7
        %v711 = vsub.s32 0, %v710
        %v712 = vrot.slane %v707, %v711
        %v714 = vmul.f32 %v699, %v712
        %v715 = vmul.f32 %v700, %v712
        %v716 = vmul.f32 %v701, %v712
        %v717 = vmul.f32 %v702, %v712
        %v718 = vmul.f32 %v703, %v712
        %v719 = vmul.f32 %v704, %v712
        %v720 = vmul.f32 %v705, %v712
        %v721 = vmul.f32 %v706, %v712
        %v722 = vsel %vm462, %v714, 0.0
        %723 = vadd.xlane.f32.xlu0 %v722
        %v724 = vpop.xlane.xlu0 %723
        %v725 = vsel %vm462, %v715, 0.0
        %726 = vadd.xlane.f32.xlu0 %v725
        %v727 = vpop.xlane.xlu0 %726
        %v728 = vsel %vm462, %v716, 0.0
        %729 = vadd.xlane.f32.xlu0 %v728
        %v730 = vpop.xlane.xlu0 %729
        %v731 = vsel %vm462, %v717, 0.0
        %732 = vadd.xlane.f32.xlu0 %v731
        %v733 = vpop.xlane.xlu0 %732
        %v734 = vsel %vm462, %v718, 0.0
        %735 = vadd.xlane.f32.xlu0 %v734
        %v736 = vpop.xlane.xlu0 %735
        %v737 = vsel %vm462, %v719, 0.0
        %738 = vadd.xlane.f32.xlu0 %v737
        %v739 = vpop.xlane.xlu0 %738
        %v740 = vsel %vm462, %v720, 0.0
        %741 = vadd.xlane.f32.xlu0 %v740
        %v742 = vpop.xlane.xlu0 %741
        %v743 = vsel %vm462, %v721, 0.0
        %744 = vadd.xlane.f32.xlu0 %v743
        %v745 = vpop.xlane.xlu0 %744
        %v754 = vlaneseq
        %v755 = vand.u32 %v754, 127
        %v756 = vlaneseq
        %v757 = vshrl.u32 %v756, 7
        %v758 = vsub.s32 %v755, %v757
        %v759 = vrot.slane %v724, %v758
        %v760 = vlaneseq
        %v761 = vshrl.u32 %v760, 7
        %v762 = vsub.s32 %v755, %v761
        %v763 = vrot.slane %v727, %v762
        %v764 = vlaneseq
        %v765 = vshrl.u32 %v764, 7
        %v766 = vsub.s32 %v755, %v765
        %v767 = vrot.slane %v730, %v766
        %v768 = vlaneseq
        %v769 = vshrl.u32 %v768, 7
        %v770 = vsub.s32 %v755, %v769
        %v771 = vrot.slane %v733, %v770
        %v772 = vlaneseq
        %v773 = vshrl.u32 %v772, 7
        %v774 = vsub.s32 %v755, %v773
        %v775 = vrot.slane %v736, %v774
        %v776 = vlaneseq
        %v777 = vshrl.u32 %v776, 7
        %v778 = vsub.s32 %v755, %v777
        %v779 = vrot.slane %v739, %v778
        %v780 = vlaneseq
        %v781 = vshrl.u32 %v780, 7
        %v782 = vsub.s32 %v755, %v781
        %v783 = vrot.slane %v742, %v782
        %v784 = vlaneseq
        %v785 = vshrl.u32 %v784, 7
        %v786 = vsub.s32 %v755, %v785
        %v787 = vrot.slane %v745, %v786
        %vm788 = vcmask 1041409
        %v789 = vsel %vm788, %v763, %v759
        %vm790 = vcmask 1042434
        %v791 = vsel %vm790, %v767, %v789
        %vm792 = vcmask 1043459
        %v793 = vsel %vm792, %v771, %v791
        %vm794 = vcmask 1044484
        %v795 = vsel %vm794, %v775, %v793
        %vm796 = vcmask 1045509
        %v797 = vsel %vm796, %v779, %v795
        %vm798 = vcmask 1046534
        %v799 = vsel %vm798, %v783, %v797
        %vm800 = vcmask 1047559
        %v801 = vsel %vm800, %v787, %v799
        %vm803 = vcmask 64512
        %v804 = vsel %vm803, %v801, -inf
        %805 = vmax.xlane.f32.xlu0 %v804
        %v806 = vpop.xlane.xlu0 %805
        %v808 = vlaneseq
        %v809 = vshrl.u32 %v808, 7
        %v810 = vsub.s32 0, %v809
        %v811 = vrot.slane %v806, %v810
        %v812 = vlaneseq
        %v813 = vshrl.u32 %v812, 7
        %v814 = vsub.s32 1, %v813
        %v815 = vrot.slane %v806, %v814
        %v816 = vlaneseq
        %v817 = vshrl.u32 %v816, 7
        %v818 = vsub.s32 2, %v817
        %v819 = vrot.slane %v806, %v818
        %v820 = vlaneseq
        %v821 = vshrl.u32 %v820, 7
        %v822 = vsub.s32 3, %v821
        %v823 = vrot.slane %v806, %v822
        %v824 = vlaneseq
        %v825 = vshrl.u32 %v824, 7
        %v826 = vsub.s32 4, %v825
        %v827 = vrot.slane %v806, %v826
        %v828 = vlaneseq
        %v829 = vshrl.u32 %v828, 7
        %v830 = vsub.s32 5, %v829
        %v831 = vrot.slane %v806, %v830
        %v832 = vlaneseq
        %v833 = vshrl.u32 %v832, 7
        %v834 = vsub.s32 6, %v833
        %v835 = vrot.slane %v806, %v834
        %v836 = vlaneseq
        %v837 = vshrl.u32 %v836, 7
        %v838 = vsub.s32 7, %v837
        %v839 = vrot.slane %v806, %v838
        %v848 = vsub.f32 %v724, %v811
        %v849 = vsub.f32 %v727, %v815
        %v850 = vsub.f32 %v730, %v819
        %v851 = vsub.f32 %v733, %v823
        %v852 = vsub.f32 %v736, %v827
        %v853 = vsub.f32 %v739, %v831
        %v854 = vsub.f32 %v742, %v835
        %v855 = vsub.f32 %v745, %v839
        %v856 = vmul.f32 %v848, 1.442695
        %v857 = vpow.pop %v856
        %v858 = vmul.f32 %v849, 1.442695
        %v859 = vpow.pop %v858
        %v860 = vmul.f32 %v850, 1.442695
        %v861 = vpow.pop %v860
        %v862 = vmul.f32 %v851, 1.442695
        %v863 = vpow.pop %v862
        %v864 = vmul.f32 %v852, 1.442695
        %v865 = vpow.pop %v864
        %v866 = vmul.f32 %v853, 1.442695
        %v867 = vpow.pop %v866
        %v868 = vmul.f32 %v854, 1.442695
        %v869 = vpow.pop %v868
        %v870 = vmul.f32 %v855, 1.442695
        %v871 = vpow.pop %v870
        %880 = vset.pattern.permute.xlu0 0
        %881 = vperm.xlu0 %880, %v857
        %v882 = vpop.permute.xlu0 %881
        %883 = vset.pattern.permute.xlu0 0
        %884 = vperm.xlu0 %883, %v859
        %v885 = vpop.permute.xlu0 %884
        %886 = vset.pattern.permute.xlu0 0
        %887 = vperm.xlu0 %886, %v861
        %v888 = vpop.permute.xlu0 %887
        %889 = vset.pattern.permute.xlu0 0
        %890 = vperm.xlu0 %889, %v863
        %v891 = vpop.permute.xlu0 %890
        %892 = vset.pattern.permute.xlu0 0
        %893 = vperm.xlu0 %892, %v865
        %v894 = vpop.permute.xlu0 %893
        %895 = vset.pattern.permute.xlu0 0
        %896 = vperm.xlu0 %895, %v867
        %v897 = vpop.permute.xlu0 %896
        %898 = vset.pattern.permute.xlu0 0
        %899 = vperm.xlu0 %898, %v869
        %v900 = vpop.permute.xlu0 %899
        %901 = vset.pattern.permute.xlu0 0
        %902 = vperm.xlu0 %901, %v871
        %v903 = vpop.permute.xlu0 %902
        %v904 = vlaneseq
        %v905 = vshrl.u32 %v904, 7
        %v906 = vsub.s32 %v755, %v905
        %v907 = vrot.slane %v882, %v906
        %v908 = vlaneseq
        %v909 = vshrl.u32 %v908, 7
        %v910 = vsub.s32 %v755, %v909
        %v911 = vrot.slane %v885, %v910
        %v912 = vlaneseq
        %v913 = vshrl.u32 %v912, 7
        %v914 = vsub.s32 %v755, %v913
        %v915 = vrot.slane %v888, %v914
        %v916 = vlaneseq
        %v917 = vshrl.u32 %v916, 7
        %v918 = vsub.s32 %v755, %v917
        %v919 = vrot.slane %v891, %v918
        %v920 = vlaneseq
        %v921 = vshrl.u32 %v920, 7
        %v922 = vsub.s32 %v755, %v921
        %v923 = vrot.slane %v894, %v922
        %v924 = vlaneseq
        %v925 = vshrl.u32 %v924, 7
        %v926 = vsub.s32 %v755, %v925
        %v927 = vrot.slane %v897, %v926
        %v928 = vlaneseq
        %v929 = vshrl.u32 %v928, 7
        %v930 = vsub.s32 %v755, %v929
        %v931 = vrot.slane %v900, %v930
        %v932 = vlaneseq
        %v933 = vshrl.u32 %v932, 7
        %v934 = vsub.s32 %v755, %v933
        %v935 = vrot.slane %v903, %v934
        %v936 = vsel %vm788, %v911, %v907
        %v937 = vsel %vm790, %v915, %v936
        %v938 = vsel %vm792, %v919, %v937
        %v939 = vsel %vm794, %v923, %v938
        %v940 = vsel %vm796, %v927, %v939
        %v941 = vsel %vm798, %v931, %v940
        %v942 = vsel %vm800, %v935, %v941
        %v944 = vsel %vm803, %v942, 0.0
        %945 = vadd.xlane.f32.xlu0 %v944
        %v946 = vpop.xlane.xlu0 %945
        %v947 = vrcp.pop %v946
        %v949 = vlaneseq
        %v950 = vshrl.u32 %v949, 7
        %v951 = vsub.s32 0, %v950
        %v952 = vrot.slane %v947, %v951
        %v953 = vlaneseq
        %v954 = vshrl.u32 %v953, 7
        %v955 = vsub.s32 1, %v954
        %v956 = vrot.slane %v947, %v955
        %v957 = vlaneseq
        %v958 = vshrl.u32 %v957, 7
        %v959 = vsub.s32 2, %v958
        %v960 = vrot.slane %v947, %v959
        %v961 = vlaneseq
        %v962 = vshrl.u32 %v961, 7
        %v963 = vsub.s32 3, %v962
        %v964 = vrot.slane %v947, %v963
        %v965 = vlaneseq
        %v966 = vshrl.u32 %v965, 7
        %v967 = vsub.s32 4, %v966
        %v968 = vrot.slane %v947, %v967
        %v969 = vlaneseq
        %v970 = vshrl.u32 %v969, 7
        %v971 = vsub.s32 5, %v970
        %v972 = vrot.slane %v947, %v971
        %v973 = vlaneseq
        %v974 = vshrl.u32 %v973, 7
        %v975 = vsub.s32 6, %v974
        %v976 = vrot.slane %v947, %v975
        %v977 = vlaneseq
        %v978 = vshrl.u32 %v977, 7
        %v979 = vsub.s32 7, %v978
        %v980 = vrot.slane %v947, %v979
        %v989 = vmul.f32 %v857, %v952
        %v990 = vmul.f32 %v859, %v956
        %v991 = vmul.f32 %v861, %v960
        %v992 = vmul.f32 %v863, %v964
        %v993 = vmul.f32 %v865, %v968
        %v994 = vmul.f32 %v867, %v972
        %v995 = vmul.f32 %v869, %v976
        %v996 = vmul.f32 %v871, %v980
        %998 = vset.pattern.permute.xlu0 0
        %999 = vperm.xlu0 %998, %v989
        %v1000 = vpop.permute.xlu0 %999
        %1003 = vset.pattern.permute.xlu0 0
        %1004 = vperm.xlu0 %1003, %v990
        %v1005 = vpop.permute.xlu0 %1004
        %1008 = vset.pattern.permute.xlu0 0
        %1009 = vperm.xlu0 %1008, %v991
        %v1010 = vpop.permute.xlu0 %1009
        %1013 = vset.pattern.permute.xlu0 0
        %1014 = vperm.xlu0 %1013, %v992
        %v1015 = vpop.permute.xlu0 %1014
        %1018 = vset.pattern.permute.xlu0 0
        %1019 = vperm.xlu0 %1018, %v993
        %v1020 = vpop.permute.xlu0 %1019
        %1023 = vset.pattern.permute.xlu0 0
        %1024 = vperm.xlu0 %1023, %v994
        %v1025 = vpop.permute.xlu0 %1024
        %1028 = vset.pattern.permute.xlu0 0
        %1029 = vperm.xlu0 %1028, %v995
        %v1030 = vpop.permute.xlu0 %1029
        %1033 = vset.pattern.permute.xlu0 0
        %1034 = vperm.xlu0 %1033, %v996
        %v1035 = vpop.permute.xlu0 %1034
        %v1037 = vmul.f32 %v1000, %v403
        %v1038 = vmul.f32 %v1005, %v404
        %v1039 = vmul.f32 %v1010, %v405
        %v1040 = vmul.f32 %v1015, %v406
        %v1041 = vmul.f32 %v1020, %v407
        %v1042 = vmul.f32 %v1025, %v408
        %v1043 = vmul.f32 %v1030, %v409
        %v1044 = vmul.f32 %v1035, %v410
        %v1045 = vsel %vm462, %v1037, 0.0
        %v1046 = vrot.slane %v1045, 4
        %v1047 = vadd.f32 %v1045, %v1046
        %v1048 = vrot.slane %v1047, 2
        %v1049 = vadd.f32 %v1047, %v1048
        %v1050 = vrot.slane %v1049, 1
        %v1051 = vadd.f32 %v1049, %v1050
        %v1052 = vsel %vm462, %v1038, 0.0
        %v1053 = vrot.slane %v1052, 4
        %v1054 = vadd.f32 %v1052, %v1053
        %v1055 = vrot.slane %v1054, 2
        %v1056 = vadd.f32 %v1054, %v1055
        %v1057 = vrot.slane %v1056, 1
        %v1058 = vadd.f32 %v1056, %v1057
        %v1059 = vsel %vm462, %v1039, 0.0
        %v1060 = vrot.slane %v1059, 4
        %v1061 = vadd.f32 %v1059, %v1060
        %v1062 = vrot.slane %v1061, 2
        %v1063 = vadd.f32 %v1061, %v1062
        %v1064 = vrot.slane %v1063, 1
        %v1065 = vadd.f32 %v1063, %v1064
        %v1066 = vsel %vm462, %v1040, 0.0
        %v1067 = vrot.slane %v1066, 4
        %v1068 = vadd.f32 %v1066, %v1067
        %v1069 = vrot.slane %v1068, 2
        %v1070 = vadd.f32 %v1068, %v1069
        %v1071 = vrot.slane %v1070, 1
        %v1072 = vadd.f32 %v1070, %v1071
        %v1073 = vsel %vm462, %v1041, 0.0
        %v1074 = vrot.slane %v1073, 4
        %v1075 = vadd.f32 %v1073, %v1074
        %v1076 = vrot.slane %v1075, 2
        %v1077 = vadd.f32 %v1075, %v1076
        %v1078 = vrot.slane %v1077, 1
        %v1079 = vadd.f32 %v1077, %v1078
        %v1080 = vsel %vm462, %v1042, 0.0
        %v1081 = vrot.slane %v1080, 4
        %v1082 = vadd.f32 %v1080, %v1081
        %v1083 = vrot.slane %v1082, 2
        %v1084 = vadd.f32 %v1082, %v1083
        %v1085 = vrot.slane %v1084, 1
        %v1086 = vadd.f32 %v1084, %v1085
        %v1087 = vsel %vm462, %v1043, 0.0
        %v1088 = vrot.slane %v1087, 4
        %v1089 = vadd.f32 %v1087, %v1088
        %v1090 = vrot.slane %v1089, 2
        %v1091 = vadd.f32 %v1089, %v1090
        %v1092 = vrot.slane %v1091, 1
        %v1093 = vadd.f32 %v1091, %v1092
        %v1094 = vsel %vm462, %v1044, 0.0
        %v1095 = vrot.slane %v1094, 4
        %v1096 = vadd.f32 %v1094, %v1095
        %v1097 = vrot.slane %v1096, 2
        %v1098 = vadd.f32 %v1096, %v1097
        %v1099 = vrot.slane %v1098, 1
        %v1100 = vadd.f32 %v1098, %v1099
        %v1101 = vlaneseq
        %v1102 = vshrl.u32 %v1101, 7
        %v1103 = vsub.s32 %v755, %v1102
        %v1104 = vrot.slane %v1000, %v1103
        %v1105 = vlaneseq
        %v1106 = vshrl.u32 %v1105, 7
        %v1107 = vsub.s32 %v755, %v1106
        %v1108 = vrot.slane %v1005, %v1107
        %v1109 = vlaneseq
        %v1110 = vshrl.u32 %v1109, 7
        %v1111 = vsub.s32 %v755, %v1110
        %v1112 = vrot.slane %v1010, %v1111
        %v1113 = vlaneseq
        %v1114 = vshrl.u32 %v1113, 7
        %v1115 = vsub.s32 %v755, %v1114
        %v1116 = vrot.slane %v1015, %v1115
        %v1117 = vlaneseq
        %v1118 = vshrl.u32 %v1117, 7
        %v1119 = vsub.s32 %v755, %v1118
        %v1120 = vrot.slane %v1020, %v1119
        %v1121 = vlaneseq
        %v1122 = vshrl.u32 %v1121, 7
        %v1123 = vsub.s32 %v755, %v1122
        %v1124 = vrot.slane %v1025, %v1123
        %v1125 = vlaneseq
        %v1126 = vshrl.u32 %v1125, 7
        %v1127 = vsub.s32 %v755, %v1126
        %v1128 = vrot.slane %v1030, %v1127
        %v1129 = vlaneseq
        %v1130 = vshrl.u32 %v1129, 7
        %v1131 = vsub.s32 %v755, %v1130
        %v1132 = vrot.slane %v1035, %v1131
        %v1133 = vsel %vm788, %v1108, %v1104
        %v1134 = vsel %vm790, %v1112, %v1133
        %v1135 = vsel %vm792, %v1116, %v1134
        %v1136 = vsel %vm794, %v1120, %v1135
        %v1137 = vsel %vm796, %v1124, %v1136
        %v1138 = vsel %vm798, %v1128, %v1137
        %v1139 = vsel %vm800, %v1132, %v1138
        %1141 = vst.msk [vmem:[%s401] sm:$0xff] %vm803, %v1139
        %v1150 = vsel %vm788, %v1058, %v1051
        %v1151 = vsel %vm790, %v1065, %v1150
        %v1152 = vsel %vm792, %v1072, %v1151
        %v1153 = vsel %vm794, %v1079, %v1152
        %v1154 = vsel %vm796, %v1086, %v1153
        %v1155 = vsel %vm798, %v1093, %v1154
        %v1156 = vsel %vm800, %v1100, %v1155
        %1158 = vst.msk [vmem:[%s396] sm:$0xff] %vm462, %v1156
        %p1159 = scmp.lt.s32.totalorder %s30, 1
        %s1160 = scalar_select %p1159, %s30, 1
        %s1161 = smul.addr %s1160, 8
        %s1162 = scalar_lea.vmem %s7, %s1161
        %s1163 = sand.u32 %s221, 1
        %s1164 = scalar_lea.sflag [#allocation4], %s1163
        %s1165 = sand.u32 %s221, 1
        %s1166 = smul.addr %s1165, 8
        %s1167 = scalar_lea.vmem [#allocation10], %s1166
        // Predicated region
        $region65: #{tpu_custom_call.1} parent=47 // pred_check
          %p1168 = pneg %p205
        $region66: #{tpu_custom_call.1} parent=47 // pred_check_branch
          %1170 = sbr.rel (%p1168) target = $region68
        $region67: #{tpu_custom_call.1} parent=47 // pred_region
          _
        $region68: #{tpu_custom_call.1} parent=47 // pred_fallthru
          _
        // Predicated region
        $region69: #{tpu_custom_call.1} parent=47 // pred_check
          %p1171 = pneg %p231
        $region70: #{tpu_custom_call.1} parent=47 // pred_check_branch
          %1173 = sbr.rel (%p1171) target = $region72
        $region71: #{tpu_custom_call.1} parent=47 // pred_region
          %s1175 = ssub.s32 128, 128
          %1176 = vsyncadd %s1164, %s1175
          %s1177 = smul.addr %s30, 128
          %s1178 = scalar_lea.hbm %s8, %s1177
          %s1180 = sshll.u32 %s1167, 4
          %s1181 = int_to_ptr.vmem [resolvable:$true] %s1180
          %1183 = dma.vmem_to_hbm [thread:$0]  %s1181, 128, %s1178, %s1164
        $region72: #{tpu_custom_call.1} parent=47 // pred_fallthru
          _
      $region48: #{tpu_custom_call.1} parent=5 // pred_fallthru
        _
      %p1184 = scmp.le.s32.totalorder 2, %s25
      // Predicated region
      $region73: #{tpu_custom_call.1} parent=5 // pred_check
        %p1185 = pneg %p1184
      $region74: #{tpu_custom_call.1} parent=5 // pred_check_branch
        %1187 = sbr.rel (%p1185) target = $region76
      $region75: #{tpu_custom_call.1} parent=5 // pred_region
        %s1188 = ssub.s32 %s25, 2
        // Predicated region
        $region77: #{tpu_custom_call.1} parent=75 // pred_check
          %p1189 = pneg %p211
        $region78: #{tpu_custom_call.1} parent=75 // pred_check_branch
          %1191 = sbr.rel (%p1189) target = $region80
        $region79: #{tpu_custom_call.1} parent=75 // pred_region
          %p1192 = scmp.lt.s32.totalorder %s31, 1
          %s1193 = scalar_select %p1192, %s31, 1
          %s1194 = smul.addr %s1193, 8
          %s1195 = scalar_lea.vmem %s7, %s1194
        $region80: #{tpu_custom_call.1} parent=75 // pred_fallthru
          _
        // Predicated region
        $region81: #{tpu_custom_call.1} parent=75 // pred_check
          %p1196 = pneg %p237
        $region82: #{tpu_custom_call.1} parent=75 // pred_check_branch
          %1198 = sbr.rel (%p1196) target = $region84
        $region83: #{tpu_custom_call.1} parent=75 // pred_region
          %s1199 = sand.u32 %s222, 1
          %s1200 = scalar_lea.sflag [#allocation4], %s1199
          %s1201 = sand.u32 %s222, 1
          %s1202 = smul.addr %s1201, 8
          %s1203 = scalar_lea.vmem [#allocation10], %s1202
          %1204 = dma.done %s1200, 128
        $region84: #{tpu_custom_call.1} parent=75 // pred_fallthru
          _
      $region76: #{tpu_custom_call.1} parent=5 // pred_fallthru
        _
    $region6: #{tpu_custom_call.1} parent=1 // loop_footer
      %s29 = sadd.s32 1, %s25
    $region7: #{tpu_custom_call.1} parent=1 // loop_footer_branch
      %24 = sbr.rel target = $region3
    $region8: #{tpu_custom_call.1} parent=1 // loop_exit
      _
    %1205 = vsyncpa [#allocation3], 1
    %s1206 = scalar_lea.sflag [#allocation3], 1
    %1207 = vsyncpa %s1206, 1
    %1208 = vsyncpa [#allocation6], 1
    %s1209 = scalar_lea.sflag [#allocation6], 1
    %1210 = vsyncpa %s1209, 1
    %1211 = vsyncpa [#allocation9], 1
    %1212 = vsyncpa [#allocation4], 1
    %s1213 = scalar_lea.sflag [#allocation4], 1
    %1214 = vsyncpa %s1213, 1

</llo_original>
